<compile_context>
chip_gen: v7x
topology: tpu7x:2x2x1
jax: 0.10.0
libtpu: 0.0.40
codegen_flags: <defaults>
</compile_context>

<pallas_src>
import functools

import jax
import jax.numpy as jnp
from jax.experimental import pallas as pl
from jax.experimental.pallas import tpu as pltpu

LANE = 128        # lane-dense padded width for the classifier output
SUBLANE = 8       # sublane padding for the batch dimension
VOCAB_PAD = 128   # lane-dense padded vocab for the one-hot lookup matmul


def _rnn_kernel(tok_ref, lens_ref, proj_ref, w_hh_ref, w_fc_ref, b_fc_ref,
                out_ref, *, seq_len, batch_pad):
    """Entire forward in one invocation (no grid).

    tok_ref  : (T*Bp, 1)  int32   time-major token ids (row = t*Bp + b)
    lens_ref : (Bp, 1)    int32   true sequence lengths (0 for padded rows)
    proj_ref : (Vp, H)    f32     fused emb @ W_ih^T + (b_ih + b_hh) table
    w_hh_ref : (H, H)     f32     W_hh^T
    w_fc_ref : (H, LANE)  f32     W_fc^T zero-padded to 128 lanes
    b_fc_ref : (1, LANE)  f32
    out_ref  : (Bp, LANE) f32     lane-dense padded logits
    """
    hidden = w_hh_ref.shape[1]
    vocab_pad = proj_ref.shape[0]
    rows = seq_len * batch_pad

    # Embedding lookup fused with the input projection: one-hot rows times the
    # precomputed projection table -> ONE MXU matmul, hoisted off the
    # recurrent chain.  Result (rows, H) stays in vregs (no VMEM scratch).
    tok = tok_ref[...]                                              # (rows, 1)
    lane_ids = jax.lax.broadcasted_iota(jnp.int32, (rows, vocab_pad), 1)
    one_hot = jnp.where(lane_ids == tok, 1.0, 0.0).astype(jnp.float32)
    p = jnp.dot(one_hot, proj_ref[...],
                preferred_element_type=jnp.float32)                 # (rows, H)

    lens = lens_ref[...]                                            # (Bp, 1)
    w_hh = w_hh_ref[...]                                            # (H, H) resident

    h = jnp.zeros((batch_pad, hidden), jnp.float32)
    for t in range(seq_len):            # static unroll: all slices are static
        p_t = p[t * batch_pad:(t + 1) * batch_pad, :]               # (Bp, H), aligned
        h_new = jnp.tanh(
            p_t + jnp.dot(h, w_hh, preferred_element_type=jnp.float32))
        # Packed-sequence semantics: rows whose sequence already ended keep h.
        h = jnp.where(t < lens, h_new, h)

    # Dropout is eval-mode identity here.
    # TODO(synk): training-mode dropout (Bernoulli mask) not implemented.
    out_ref[...] = (
        jnp.dot(h, w_fc_ref[...], preferred_element_type=jnp.float32)
        + b_fc_ref[...]
    )


def prepare_params(params, *, vocab_pad=VOCAB_PAD):
    """One-time weight preparation (hoisted out of the per-call path)."""
    emb = params["emb"].astype(jnp.float32)          # (V, E)
    w_ih = params["w_ih"].astype(jnp.float32)        # (H, E)
    w_hh = params["w_hh"].astype(jnp.float32)        # (H, H)
    b_rnn = (params["b_ih"] + params["b_hh"]).astype(jnp.float32)   # (H,)
    w_fc = params["w_fc"].astype(jnp.float32)        # (C, H)
    b_fc = params["b_fc"].astype(jnp.float32)        # (C,)

    V, _ = emb.shape
    H = w_hh.shape[0]
    C = w_fc.shape[0]
    Vp = max(vocab_pad, ((V + SUBLANE - 1) // SUBLANE) * SUBLANE)

    # Fused embedding + input projection table: proj[v] = emb[v] @ W_ih^T + b.
    proj = emb @ w_ih.T + b_rnn[None, :]                              # (V, H)
    proj_pad = jnp.zeros((Vp, H), jnp.float32).at[:V].set(proj)       # (Vp, H)
    w_fc_pad = jnp.zeros((H, LANE), jnp.float32).at[:, :C].set(w_fc.T)
    b_fc_pad = jnp.zeros((1, LANE), jnp.float32).at[:, :C].set(b_fc)

    return {
        "proj_table": proj_pad,
        "w_hh_t": w_hh.T,
        "w_fc_pad": w_fc_pad,
        "b_fc_pad": b_fc_pad,
        "num_classes": C,
    }


def custom_rnn_forward(tokens, lengths, prepped):
    """tokens: int32 [B, T]; lengths: int32 [B]; returns logits [B, num_classes]."""
    B, T = tokens.shape
    Bp = ((B + SUBLANE - 1) // SUBLANE) * SUBLANE
    C = prepped["num_classes"]

    # Tiny per-call glue: time-major, batch-padded token ids and lengths.
    tok_tm = jnp.zeros((T, Bp), jnp.int32).at[:, :B].set(
        tokens.T.astype(jnp.int32))
    tok_col = tok_tm.reshape(T * Bp, 1)
    lens_pad = jnp.zeros((Bp, 1), jnp.int32).at[:B, 0].set(
        lengths.astype(jnp.int32))

    kernel = functools.partial(_rnn_kernel, seq_len=T, batch_pad=Bp)
    vmem = lambda: pl.BlockSpec(memory_space=pltpu.MemorySpace.VMEM)

    out_pad = pl.pallas_call(
        kernel,
        out_shape=jax.ShapeDtypeStruct((Bp, LANE), jnp.float32),
        in_specs=[vmem() for _ in range(6)],
        out_specs=vmem(),
    )(tok_col, lens_pad, prepped["proj_table"], prepped["w_hh_t"],
      prepped["w_fc_pad"], prepped["b_fc_pad"])

    return out_pad[:B, :C]


def _reference_forward(tokens, lengths, params):
    """Pure-JAX reference of the packed-RNN forward (eval-mode dropout)."""
    emb, w_ih, w_hh = params["emb"], params["w_ih"], params["w_hh"]
    b_ih, b_hh = params["b_ih"], params["b_hh"]
    w_fc, b_fc = params["w_fc"], params["b_fc"]
    x = jnp.take(emb, tokens, axis=0)             # (B, T, E)
    B, T, _ = x.shape
    H = w_hh.shape[0]
    h = jnp.zeros((B, H), jnp.float32)
    for t in range(T):
        pre = x[:, t] @ w_ih.T + b_ih + h @ w_hh.T + b_hh
        h_new = jnp.tanh(pre)
        h = jnp.where((t < lengths)[:, None], h_new, h)
    return h @ w_fc.T + b_fc


if __name__ == "__main__":
    # Small shapes consistent with the module.
    VOCAB, EMB_DIM, HIDDEN, NUM_CLASSES = 50, 32, 32, 5
    B, T = 4, 8

    key = jax.random.PRNGKey(0)
    k_emb, k_ih, k_hh, k_bi, k_bh, k_fw, k_fb, k_tok = jax.random.split(key, 8)

    params = {
        "emb": jax.random.normal(k_emb, (VOCAB, EMB_DIM), jnp.float32) * 0.1,
        "w_ih": jax.random.normal(k_ih, (HIDDEN, EMB_DIM), jnp.float32) * 0.1,
        "w_hh": jax.random.normal(k_hh, (HIDDEN, HIDDEN), jnp.float32) * 0.1,
        "b_ih": jax.random.normal(k_bi, (HIDDEN,), jnp.float32) * 0.1,
        "b_hh": jax.random.normal(k_bh, (HIDDEN,), jnp.float32) * 0.1,
        "w_fc": jax.random.normal(k_fw, (NUM_CLASSES, HIDDEN), jnp.float32) * 0.1,
        "b_fc": jax.random.normal(k_fb, (NUM_CLASSES,), jnp.float32) * 0.1,
    }

    tokens = jax.random.randint(k_tok, (B, T), 0, VOCAB, dtype=jnp.int32)
    lengths = jnp.array([8, 5, 3, 6], dtype=jnp.int32)   # variable true lengths

    prepped = prepare_params(params)                      # one-time weight prep
    logits = custom_rnn_forward(tokens, lengths, prepped)
    logits = jax.block_until_ready(logits)

    ref = _reference_forward(tokens, lengths, params)
    assert logits.shape == (B, NUM_CLASSES)
    assert jnp.allclose(logits, ref, atol=1e-4, rtol=1e-4), "mismatch vs reference"

    print("KERNEL_OK")
</pallas_src>

<mosaic_0001>
module attributes {stable_mosaic.version = 11 : i64} {
  func.func @_rnn_kernel(%arg0: memref<64x1xi32, #tpu.memory_space<vmem>>, %arg1: memref<8x1xi32, #tpu.memory_space<vmem>>, %arg2: memref<128x32xf32, #tpu.memory_space<vmem>>, %arg3: memref<32x32xf32, #tpu.memory_space<vmem>>, %arg4: memref<32x128xf32, #tpu.memory_space<vmem>>, %arg5: memref<1x128xf32, #tpu.memory_space<vmem>>, %arg6: memref<8x128xf32, #tpu.memory_space<vmem>>) attributes {dimension_semantics = [], scalar_prefetch = 0 : i64, scratch_operands = 0 : i64, tpu.core_type = #tpu.core_type<tc>} {
    %c0 = arith.constant 0 : index
    %c0_0 = arith.constant 0 : index
    %0 = vector.load %arg0[%c0, %c0_0] : memref<64x1xi32, #tpu.memory_space<vmem>>, vector<64x1xi32>
    %1 = tpu.iota {dimensions = array<i32: 1>} : vector<64x128xi32>
    %2 = vector.broadcast %0 : vector<64x1xi32> to vector<64x128xi32>
    %3 = arith.cmpi eq, %1, %2 : vector<64x128xi32>
    %cst = arith.constant 1.000000e+00 : f32
    %cst_1 = arith.constant 0.000000e+00 : f32
    %4 = vector.broadcast %cst : f32 to vector<64x128xf32>
    %5 = vector.broadcast %cst_1 : f32 to vector<64x128xf32>
    %6 = arith.select %3, %4, %5 : vector<64x128xi1>, vector<64x128xf32>
    %c0_2 = arith.constant 0 : index
    %c0_3 = arith.constant 0 : index
    %7 = vector.load %arg2[%c0_2, %c0_3] : memref<128x32xf32, #tpu.memory_space<vmem>>, vector<128x32xf32>
    %cst_4 = arith.constant dense<0.000000e+00> : vector<64x32xf32>
    %8 = tpu.matmul %6, %7, %cst_4 {dimension_numbers = #tpu.dot_dimension_numbers<[1], [0], [0], [1], [0, 0, 1, 1], [], []>} : vector<64x128xf32>, vector<128x32xf32>, vector<64x32xf32> -> vector<64x32xf32>
    %c0_5 = arith.constant 0 : index
    %c0_6 = arith.constant 0 : index
    %9 = vector.load %arg1[%c0_5, %c0_6] : memref<8x1xi32, #tpu.memory_space<vmem>>, vector<8x1xi32>
    %c0_7 = arith.constant 0 : index
    %c0_8 = arith.constant 0 : index
    %10 = vector.load %arg3[%c0_7, %c0_8] : memref<32x32xf32, #tpu.memory_space<vmem>>, vector<32x32xf32>
    %cst_9 = arith.constant 0.000000e+00 : f32
    %11 = vector.broadcast %cst_9 : f32 to vector<8x32xf32>
    %12 = vector.extract_strided_slice %8 {offsets = [0, 0], sizes = [8, 32], strides = [1, 1]} : vector<64x32xf32> to vector<8x32xf32>
    %cst_10 = arith.constant dense<0.000000e+00> : vector<8x32xf32>
    %13 = tpu.matmul %11, %10, %cst_10 {dimension_numbers = #tpu.dot_dimension_numbers<[1], [0], [0], [1], [0, 0, 1, 1], [], []>} : vector<8x32xf32>, vector<32x32xf32>, vector<8x32xf32> -> vector<8x32xf32>
    %14 = arith.addf %12, %13 : vector<8x32xf32>
    %15 = math.tanh %14 : vector<8x32xf32>
    %c0_i32 = arith.constant 0 : i32
    %16 = vector.broadcast %c0_i32 : i32 to vector<8x1xi32>
    %17 = arith.cmpi sgt, %9, %16 : vector<8x1xi32>
    %18 = vector.shape_cast %17 : vector<8x1xi1> to vector<8x1xi1>
    %19 = vector.broadcast %18 : vector<8x1xi1> to vector<8x32xi1>
    %20 = arith.select %19, %15, %11 : vector<8x32xi1>, vector<8x32xf32>
    %21 = vector.extract_strided_slice %8 {offsets = [8, 0], sizes = [8, 32], strides = [1, 1]} : vector<64x32xf32> to vector<8x32xf32>
    %cst_11 = arith.constant dense<0.000000e+00> : vector<8x32xf32>
    %22 = tpu.matmul %20, %10, %cst_11 {dimension_numbers = #tpu.dot_dimension_numbers<[1], [0], [0], [1], [0, 0, 1, 1], [], []>} : vector<8x32xf32>, vector<32x32xf32>, vector<8x32xf32> -> vector<8x32xf32>
    %23 = arith.addf %21, %22 : vector<8x32xf32>
    %24 = math.tanh %23 : vector<8x32xf32>
    %c1_i32 = arith.constant 1 : i32
    %25 = vector.broadcast %c1_i32 : i32 to vector<8x1xi32>
    %26 = arith.cmpi sgt, %9, %25 : vector<8x1xi32>
    %27 = vector.shape_cast %26 : vector<8x1xi1> to vector<8x1xi1>
    %28 = vector.broadcast %27 : vector<8x1xi1> to vector<8x32xi1>
    %29 = arith.select %28, %24, %20 : vector<8x32xi1>, vector<8x32xf32>
    %30 = vector.extract_strided_slice %8 {offsets = [16, 0], sizes = [8, 32], strides = [1, 1]} : vector<64x32xf32> to vector<8x32xf32>
    %cst_12 = arith.constant dense<0.000000e+00> : vector<8x32xf32>
    %31 = tpu.matmul %29, %10, %cst_12 {dimension_numbers = #tpu.dot_dimension_numbers<[1], [0], [0], [1], [0, 0, 1, 1], [], []>} : vector<8x32xf32>, vector<32x32xf32>, vector<8x32xf32> -> vector<8x32xf32>
    %32 = arith.addf %30, %31 : vector<8x32xf32>
    %33 = math.tanh %32 : vector<8x32xf32>
    %c2_i32 = arith.constant 2 : i32
    %34 = vector.broadcast %c2_i32 : i32 to vector<8x1xi32>
    %35 = arith.cmpi sgt, %9, %34 : vector<8x1xi32>
    %36 = vector.shape_cast %35 : vector<8x1xi1> to vector<8x1xi1>
    %37 = vector.broadcast %36 : vector<8x1xi1> to vector<8x32xi1>
    %38 = arith.select %37, %33, %29 : vector<8x32xi1>, vector<8x32xf32>
    %39 = vector.extract_strided_slice %8 {offsets = [24, 0], sizes = [8, 32], strides = [1, 1]} : vector<64x32xf32> to vector<8x32xf32>
    %cst_13 = arith.constant dense<0.000000e+00> : vector<8x32xf32>
    %40 = tpu.matmul %38, %10, %cst_13 {dimension_numbers = #tpu.dot_dimension_numbers<[1], [0], [0], [1], [0, 0, 1, 1], [], []>} : vector<8x32xf32>, vector<32x32xf32>, vector<8x32xf32> -> vector<8x32xf32>
    %41 = arith.addf %39, %40 : vector<8x32xf32>
    %42 = math.tanh %41 : vector<8x32xf32>
    %c3_i32 = arith.constant 3 : i32
    %43 = vector.broadcast %c3_i32 : i32 to vector<8x1xi32>
    %44 = arith.cmpi sgt, %9, %43 : vector<8x1xi32>
    %45 = vector.shape_cast %44 : vector<8x1xi1> to vector<8x1xi1>
    %46 = vector.broadcast %45 : vector<8x1xi1> to vector<8x32xi1>
    %47 = arith.select %46, %42, %38 : vector<8x32xi1>, vector<8x32xf32>
    %48 = vector.extract_strided_slice %8 {offsets = [32, 0], sizes = [8, 32], strides = [1, 1]} : vector<64x32xf32> to vector<8x32xf32>
    %cst_14 = arith.constant dense<0.000000e+00> : vector<8x32xf32>
    %49 = tpu.matmul %47, %10, %cst_14 {dimension_numbers = #tpu.dot_dimension_numbers<[1], [0], [0], [1], [0, 0, 1, 1], [], []>} : vector<8x32xf32>, vector<32x32xf32>, vector<8x32xf32> -> vector<8x32xf32>
    %50 = arith.addf %48, %49 : vector<8x32xf32>
    %51 = math.tanh %50 : vector<8x32xf32>
    %c4_i32 = arith.constant 4 : i32
    %52 = vector.broadcast %c4_i32 : i32 to vector<8x1xi32>
    %53 = arith.cmpi sgt, %9, %52 : vector<8x1xi32>
    %54 = vector.shape_cast %53 : vector<8x1xi1> to vector<8x1xi1>
    %55 = vector.broadcast %54 : vector<8x1xi1> to vector<8x32xi1>
    %56 = arith.select %55, %51, %47 : vector<8x32xi1>, vector<8x32xf32>
    %57 = vector.extract_strided_slice %8 {offsets = [40, 0], sizes = [8, 32], strides = [1, 1]} : vector<64x32xf32> to vector<8x32xf32>
    %cst_15 = arith.constant dense<0.000000e+00> : vector<8x32xf32>
    %58 = tpu.matmul %56, %10, %cst_15 {dimension_numbers = #tpu.dot_dimension_numbers<[1], [0], [0], [1], [0, 0, 1, 1], [], []>} : vector<8x32xf32>, vector<32x32xf32>, vector<8x32xf32> -> vector<8x32xf32>
    %59 = arith.addf %57, %58 : vector<8x32xf32>
    %60 = math.tanh %59 : vector<8x32xf32>
    %c5_i32 = arith.constant 5 : i32
    %61 = vector.broadcast %c5_i32 : i32 to vector<8x1xi32>
    %62 = arith.cmpi sgt, %9, %61 : vector<8x1xi32>
    %63 = vector.shape_cast %62 : vector<8x1xi1> to vector<8x1xi1>
    %64 = vector.broadcast %63 : vector<8x1xi1> to vector<8x32xi1>
    %65 = arith.select %64, %60, %56 : vector<8x32xi1>, vector<8x32xf32>
    %66 = vector.extract_strided_slice %8 {offsets = [48, 0], sizes = [8, 32], strides = [1, 1]} : vector<64x32xf32> to vector<8x32xf32>
    %cst_16 = arith.constant dense<0.000000e+00> : vector<8x32xf32>
    %67 = tpu.matmul %65, %10, %cst_16 {dimension_numbers = #tpu.dot_dimension_numbers<[1], [0], [0], [1], [0, 0, 1, 1], [], []>} : vector<8x32xf32>, vector<32x32xf32>, vector<8x32xf32> -> vector<8x32xf32>
    %68 = arith.addf %66, %67 : vector<8x32xf32>
    %69 = math.tanh %68 : vector<8x32xf32>
    %c6_i32 = arith.constant 6 : i32
    %70 = vector.broadcast %c6_i32 : i32 to vector<8x1xi32>
    %71 = arith.cmpi sgt, %9, %70 : vector<8x1xi32>
    %72 = vector.shape_cast %71 : vector<8x1xi1> to vector<8x1xi1>
    %73 = vector.broadcast %72 : vector<8x1xi1> to vector<8x32xi1>
    %74 = arith.select %73, %69, %65 : vector<8x32xi1>, vector<8x32xf32>
    %75 = vector.extract_strided_slice %8 {offsets = [56, 0], sizes = [8, 32], strides = [1, 1]} : vector<64x32xf32> to vector<8x32xf32>
    %cst_17 = arith.constant dense<0.000000e+00> : vector<8x32xf32>
    %76 = tpu.matmul %74, %10, %cst_17 {dimension_numbers = #tpu.dot_dimension_numbers<[1], [0], [0], [1], [0, 0, 1, 1], [], []>} : vector<8x32xf32>, vector<32x32xf32>, vector<8x32xf32> -> vector<8x32xf32>
    %77 = arith.addf %75, %76 : vector<8x32xf32>
    %78 = math.tanh %77 : vector<8x32xf32>
    %c7_i32 = arith.constant 7 : i32
    %79 = vector.broadcast %c7_i32 : i32 to vector<8x1xi32>
    %80 = arith.cmpi sgt, %9, %79 : vector<8x1xi32>
    %81 = vector.shape_cast %80 : vector<8x1xi1> to vector<8x1xi1>
    %82 = vector.broadcast %81 : vector<8x1xi1> to vector<8x32xi1>
    %83 = arith.select %82, %78, %74 : vector<8x32xi1>, vector<8x32xf32>
    %c0_18 = arith.constant 0 : index
    %c0_19 = arith.constant 0 : index
    %84 = vector.load %arg4[%c0_18, %c0_19] : memref<32x128xf32, #tpu.memory_space<vmem>>, vector<32x128xf32>
    %cst_20 = arith.constant dense<0.000000e+00> : vector<8x128xf32>
    %85 = tpu.matmul %83, %84, %cst_20 {dimension_numbers = #tpu.dot_dimension_numbers<[1], [0], [0], [1], [0, 0, 1, 1], [], []>} : vector<8x32xf32>, vector<32x128xf32>, vector<8x128xf32> -> vector<8x128xf32>
    %c0_21 = arith.constant 0 : index
    %c0_22 = arith.constant 0 : index
    %86 = vector.load %arg5[%c0_21, %c0_22] : memref<1x128xf32, #tpu.memory_space<vmem>>, vector<1x128xf32>
    %87 = vector.broadcast %86 : vector<1x128xf32> to vector<8x128xf32>
    %88 = arith.addf %85, %87 : vector<8x128xf32>
    %c0_23 = arith.constant 0 : index
    %c0_24 = arith.constant 0 : index
    %89 = vector.load %arg6[%c0_23, %c0_24] : memref<8x128xf32, #tpu.memory_space<vmem>>, vector<8x128xf32>
    tpu.vector_store %arg6[%c0_23, %c0_24], %88 {strides = array<i32>} : memref<8x128xf32, #tpu.memory_space<vmem>>, vector<8x128xf32>,
    return
  }
}

</mosaic_0001>

<llo_original>
// kernel: tpu_custom_call.1
$region0: #{tpu_custom_call.1}
  #allocation0 [shape = 'u32[]', space=smem, size = 0x4, offset = 0x4, fixed_abs, tag = 'smem constant byte address 0x4 - core index']
  #allocation1 [shape = 'u32[144,128]{1,0:T(1,128)}', space=vmem, size = 0x12000, scoped, tag = 'internal scratch']
  %s0 = inlined_call_operand.vmem [shape: s32[64,1], index: 0, kind: input, shape index: {}]
  %s1 = inlined_call_operand.vmem [shape: s32[8,1], index: 1, kind: input, shape index: {}]
  %s2 = inlined_call_operand.vmem [shape: f32[128,32], index: 2, kind: input, shape index: {}]
  %s3 = inlined_call_operand.vmem [shape: f32[32,32], index: 3, kind: input, shape index: {}]
  %s4 = inlined_call_operand.vmem [shape: f32[32,128], index: 4, kind: input, shape index: {}]
  %s5 = inlined_call_operand.vmem [shape: f32[1,128], index: 5, kind: input, shape index: {}]
  %s6 = inlined_call_operand.hbm [shape: f32[8,128], index: 6, kind: output, shape index: {}]
  %s7 = sld [smem:[#allocation0]]
  $region34: #{tpu_custom_call.1} parent=0
    _
  %s9 = ssub.s32 1, %s7
  %s10 = scalar_select 0, %s9, %s7
  $region1: #{tpu_custom_call.1} parent=0
    #allocation2 [shape = 'u8[4096]{0}', space=vmem, size = 0x1000, scoped, tag = 'output window, operand 0, single buffered']
    #allocation3 [shape = 's32[1]{0}', space=sflag, size = 0x4, scoped, tag = 'scoped memory for tpu_custom_call.1']
    %11 = vsyncpa [#allocation3], 0
    // Predicated region
    $region2: #{tpu_custom_call.1} parent=1 // pred_check
      _
    $region3: #{tpu_custom_call.1} parent=1 // pred_check_branch
      %13 = sbr.rel (0) target = $region5
    $region4: #{tpu_custom_call.1} parent=1 // pred_region
      _
    $region5: #{tpu_custom_call.1} parent=1 // pred_fallthru
      _
    // Predicated region
    $region6: #{tpu_custom_call.1} parent=1 // pred_check
      _
    $region7: #{tpu_custom_call.1} parent=1 // pred_check_branch
      %15 = sbr.rel (0) target = $region9
    $region8: #{tpu_custom_call.1} parent=1 // pred_region
      _
    $region9: #{tpu_custom_call.1} parent=1 // pred_fallthru
      _
    // Predicated region
    $region10: #{tpu_custom_call.1} parent=1 // pred_check
      _
    $region11: #{tpu_custom_call.1} parent=1 // pred_check_branch
      %17 = sbr.rel (0) target = $region13
    $region12: #{tpu_custom_call.1} parent=1 // pred_region
      _
    $region13: #{tpu_custom_call.1} parent=1 // pred_fallthru
      _
    // Predicated region
    $region14: #{tpu_custom_call.1} parent=1 // pred_check
      _
    $region15: #{tpu_custom_call.1} parent=1 // pred_check_branch
      %19 = sbr.rel (0) target = $region17
    $region16: #{tpu_custom_call.1} parent=1 // pred_region
      _
    $region17: #{tpu_custom_call.1} parent=1 // pred_fallthru
      _
    // Predicated region
    $region18: #{tpu_custom_call.1} parent=1 // pred_check
      _
    $region19: #{tpu_custom_call.1} parent=1 // pred_check_branch
      %21 = sbr.rel (0) target = $region21
    $region20: #{tpu_custom_call.1} parent=1 // pred_region
      _
    $region21: #{tpu_custom_call.1} parent=1 // pred_fallthru
      _
    // Predicated region
    $region22: #{tpu_custom_call.1} parent=1 // pred_check
      _
    $region23: #{tpu_custom_call.1} parent=1 // pred_check_branch
      %23 = sbr.rel (0) target = $region25
    $region24: #{tpu_custom_call.1} parent=1 // pred_region
      _
    $region25: #{tpu_custom_call.1} parent=1 // pred_fallthru
      _
    %v24 = vld [vmem:[%s0] sm:$0xff]
    %v25 = vld [vmem:[%s0 + $0x8] sm:$0xff]
    %v26 = vld [vmem:[%s0 + $0x10] sm:$0xff]
    %v27 = vld [vmem:[%s0 + $0x18] sm:$0xff]
    %v28 = vld [vmem:[%s0 + $0x20] sm:$0xff]
    %v29 = vld [vmem:[%s0 + $0x28] sm:$0xff]
    %v30 = vld [vmem:[%s0 + $0x30] sm:$0xff]
    %v31 = vld [vmem:[%s0 + $0x38] sm:$0xff]
    %v32 = vlaneseq
    %v33 = vand.u32 %v32, 127
    %34 = vset.pattern.permute.xlu0 0
    %35 = vperm.xlu0 %34, %v24
    %v36 = vpop.permute.xlu0 %35
    %37 = vset.pattern.permute.xlu0 0
    %38 = vperm.xlu0 %37, %v25
    %v39 = vpop.permute.xlu0 %38
    %40 = vset.pattern.permute.xlu0 0
    %41 = vperm.xlu0 %40, %v26
    %v42 = vpop.permute.xlu0 %41
    %43 = vset.pattern.permute.xlu0 0
    %44 = vperm.xlu0 %43, %v27
    %v45 = vpop.permute.xlu0 %44
    %46 = vset.pattern.permute.xlu0 0
    %47 = vperm.xlu0 %46, %v28
    %v48 = vpop.permute.xlu0 %47
    %49 = vset.pattern.permute.xlu0 0
    %50 = vperm.xlu0 %49, %v29
    %v51 = vpop.permute.xlu0 %50
    %52 = vset.pattern.permute.xlu0 0
    %53 = vperm.xlu0 %52, %v30
    %v54 = vpop.permute.xlu0 %53
    %55 = vset.pattern.permute.xlu0 0
    %56 = vperm.xlu0 %55, %v31
    %v57 = vpop.permute.xlu0 %56
    %vm58 = vcmp.eq.s32.totalorder %v33, %v36
    %vm59 = vcmp.eq.s32.totalorder %v33, %v39
    %vm60 = vcmp.eq.s32.totalorder %v33, %v42
    %vm61 = vcmp.eq.s32.totalorder %v33, %v45
    %vm62 = vcmp.eq.s32.totalorder %v33, %v48
    %vm63 = vcmp.eq.s32.totalorder %v33, %v51
    %vm64 = vcmp.eq.s32.totalorder %v33, %v54
    %vm65 = vcmp.eq.s32.totalorder %v33, %v57
    %v66 = vsel %vm58, 1.0, 0.0
    %v67 = vsel %vm59, 1.0, 0.0
    %v68 = vsel %vm60, 1.0, 0.0
    %v69 = vsel %vm61, 1.0, 0.0
    %v70 = vsel %vm62, 1.0, 0.0
    %v71 = vsel %vm63, 1.0, 0.0
    %v72 = vsel %vm64, 1.0, 0.0
    %v73 = vsel %vm65, 1.0, 0.0
    %v74 = vld [vmem:[%s2] sm:$0xff]
    %v75 = vld [vmem:[%s2 + $0x8] sm:$0xff]
    %v76 = vld [vmem:[%s2 + $0x10] sm:$0xff]
    %v77 = vld [vmem:[%s2 + $0x18] sm:$0xff]
    %v78 = vld [vmem:[%s2 + $0x20] sm:$0xff]
    %v79 = vld [vmem:[%s2 + $0x28] sm:$0xff]
    %v80 = vld [vmem:[%s2 + $0x30] sm:$0xff]
    %v81 = vld [vmem:[%s2 + $0x38] sm:$0xff]
    %v82 = vld [vmem:[%s2 + $0x40] sm:$0xff]
    %v83 = vld [vmem:[%s2 + $0x48] sm:$0xff]
    %v84 = vld [vmem:[%s2 + $0x50] sm:$0xff]
    %v85 = vld [vmem:[%s2 + $0x58] sm:$0xff]
    %v86 = vld [vmem:[%s2 + $0x60] sm:$0xff]
    %v87 = vld [vmem:[%s2 + $0x68] sm:$0xff]
    %v88 = vld [vmem:[%s2 + $0x70] sm:$0xff]
    %v89 = vld [vmem:[%s2 + $0x78] sm:$0xff]
    %90 = vmatprep.subr.mxu0 0.0
    %91 = vmatpush1.msra.mxu0 %v74
    %92 = vmatprep.subr.mxu0 0.0
    %93 = vmatpush1.msra.mxu0 %v75
    %94 = vmatprep.subr.mxu0 0.0
    %95 = vmatpush1.msra.mxu0 %v76
    %96 = vmatprep.subr.mxu0 0.0
    %97 = vmatpush1.msra.mxu0 %v77
    %98 = vmatprep.subr.mxu0 0.0
    %99 = vmatpush1.msra.mxu0 %v78
    %100 = vmatprep.subr.mxu0 0.0
    %101 = vmatpush1.msra.mxu0 %v79
    %102 = vmatprep.subr.mxu0 0.0
    %103 = vmatpush1.msra.mxu0 %v80
    %104 = vmatprep.subr.mxu0 0.0
    %105 = vmatpush1.msra.mxu0 %v81
    %106 = vmatprep.subr.mxu0 0.0
    %107 = vmatpush1.msra.mxu0 %v82
    %108 = vmatprep.subr.mxu0 0.0
    %109 = vmatpush1.msra.mxu0 %v83
    %110 = vmatprep.subr.mxu0 0.0
    %111 = vmatpush1.msra.mxu0 %v84
    %112 = vmatprep.subr.mxu0 0.0
    %113 = vmatpush1.msra.mxu0 %v85
    %114 = vmatprep.subr.mxu0 0.0
    %115 = vmatpush1.msra.mxu0 %v86
    %116 = vmatprep.subr.mxu0 0.0
    %117 = vmatpush1.msra.mxu0 %v87
    %118 = vmatprep.subr.mxu0 0.0
    %119 = vmatpush1.msra.mxu0 %v88
    %120 = vmatprep.subr.mxu0 0.0
    %121 = vmatpush1.msra.mxu0 %v89
    %122 = vmatprep.subr.mxu0 0.0
    %123 = vmatpush1.msra.mxu0 0.0
    %124 = vmatprep.subr.mxu0 0.0
    %125 = vmatpush1.msra.mxu0 0.0
    %126 = vmatprep.subr.mxu0 0.0
    %127 = vmatpush1.msra.mxu0 0.0
    %128 = vmatprep.subr.mxu0 0.0
    %129 = vmatpush1.msra.mxu0 0.0
    %130 = vmatprep.subr.mxu0 0.0
    %131 = vmatpush1.msra.mxu0 0.0
    %132 = vmatprep.subr.mxu0 0.0
    %133 = vmatpush1.msra.mxu0 0.0
    %134 = vmatprep.subr.mxu0 0.0
    %135 = vmatpush1.msra.mxu0 0.0
    %136 = vmatprep.subr.mxu0 0.0
    %137 = vmatpush1.msra.mxu0 0.0
    %138 = vmatprep.subr.mxu0 0.0
    %139 = vmatpush1.msra.mxu0 0.0
    %140 = vmatprep.subr.mxu0 0.0
    %141 = vmatpush1.msra.mxu0 0.0
    %142 = vmatprep.subr.mxu0 0.0
    %143 = vmatpush1.msra.mxu0 0.0
    %144 = vmatprep.subr.mxu0 0.0
    %145 = vmatpush1.msra.mxu0 0.0
    %146 = vmatprep.subr.mxu0 0.0
    %147 = vmatpush1.msra.mxu0 0.0
    %148 = vmatprep.subr.mxu0 0.0
    %149 = vmatpush1.msra.mxu0 0.0
    %150 = vmatprep.subr.mxu0 0.0
    %151 = vmatpush1.msra.mxu0 0.0
    %152 = vmatprep.subr.mxu0 0.0
    %153 = vmatpush1.msra.mxu0 0.0
    %154 = vmatprep.mubr.f32.mxu0 0.0
    %155 = vmatmul.mubr.f32.gmra.mrb[0].mxu0 %v66
    %v156 = vpop.f32.mrb[0].mxu0
    %v157 = vadd.f32 0.0, %v156
    %v158 = vpop.f32.mrb[0].mxu0
    %159 = vmatprep.mubr.f32.mxu0 0.0
    %160 = vmatmul.mubr.f32.gmra.mrb[0].mxu0 %v67
    %v161 = vpop.f32.mrb[0].mxu0
    %v162 = vadd.f32 0.0, %v161
    %v163 = vpop.f32.mrb[0].mxu0
    %164 = vmatprep.mubr.f32.mxu0 0.0
    %165 = vmatmul.mubr.f32.gmra.mrb[0].mxu0 %v68
    %v166 = vpop.f32.mrb[0].mxu0
    %v167 = vadd.f32 0.0, %v166
    %v168 = vpop.f32.mrb[0].mxu0
    %169 = vmatprep.mubr.f32.mxu0 0.0
    %170 = vmatmul.mubr.f32.gmra.mrb[0].mxu0 %v69
    %v171 = vpop.f32.mrb[0].mxu0
    %v172 = vadd.f32 0.0, %v171
    %v173 = vpop.f32.mrb[0].mxu0
    %174 = vmatprep.mubr.f32.mxu0 0.0
    %175 = vmatmul.mubr.f32.gmra.mrb[0].mxu0 %v70
    %v176 = vpop.f32.mrb[0].mxu0
    %v177 = vadd.f32 0.0, %v176
    %v178 = vpop.f32.mrb[0].mxu0
    %179 = vmatprep.mubr.f32.mxu0 0.0
    %180 = vmatmul.mubr.f32.gmra.mrb[0].mxu0 %v71
    %v181 = vpop.f32.mrb[0].mxu0
    %v182 = vadd.f32 0.0, %v181
    %v183 = vpop.f32.mrb[0].mxu0
    %184 = vmatprep.mubr.f32.mxu0 0.0
    %185 = vmatmul.mubr.f32.gmra.mrb[0].mxu0 %v72
    %v186 = vpop.f32.mrb[0].mxu0
    %v187 = vadd.f32 0.0, %v186
    %v188 = vpop.f32.mrb[0].mxu0
    %189 = vmatprep.mubr.f32.mxu0 0.0
    %190 = vmatmul.mubr.f32.gmra.mrb[0].mxu0 %v73
    %v191 = vpop.f32.mrb[0].mxu0
    %v192 = vadd.f32 0.0, %v191
    %v193 = vpop.f32.mrb[0].mxu0
    %194 = vdwg.mxu0
    %v195 = vld [vmem:[%s1] sm:$0xff]
    %v196 = vld [vmem:[%s3] sm:$0xff]
    %v197 = vld [vmem:[%s3 + $0x8] sm:$0xff]
    %v198 = vld [vmem:[%s3 + $0x10] sm:$0xff]
    %v199 = vld [vmem:[%s3 + $0x18] sm:$0xff]
    %vm200 = vcmask 261120
    %v202 = vsel %vm200, 0.0, 0
    %204 = vmatprep.subr.mxu0 0.0
    %205 = vmatpush1.msra.mxu0 %v196
    %206 = vmatprep.subr.mxu0 0.0
    %207 = vmatpush1.msra.mxu0 %v197
    %208 = vmatprep.subr.mxu0 0.0
    %209 = vmatpush1.msra.mxu0 %v198
    %210 = vmatprep.subr.mxu0 0.0
    %211 = vmatpush1.msra.mxu0 %v199
    %212 = vmatprep.subr.mxu0 0.0
    %213 = vmatpush1.msra.mxu0 0.0
    %214 = vmatprep.subr.mxu0 0.0
    %215 = vmatpush1.msra.mxu0 0.0
    %216 = vmatprep.subr.mxu0 0.0
    %217 = vmatpush1.msra.mxu0 0.0
    %218 = vmatprep.subr.mxu0 0.0
    %219 = vmatpush1.msra.mxu0 0.0
    %220 = vmatprep.subr.mxu0 0.0
    %221 = vmatpush1.msra.mxu0 0.0
    %222 = vmatprep.subr.mxu0 0.0
    %223 = vmatpush1.msra.mxu0 0.0
    %224 = vmatprep.subr.mxu0 0.0
    %225 = vmatpush1.msra.mxu0 0.0
    %226 = vmatprep.subr.mxu0 0.0
    %227 = vmatpush1.msra.mxu0 0.0
    %228 = vmatprep.subr.mxu0 0.0
    %229 = vmatpush1.msra.mxu0 0.0
    %230 = vmatprep.subr.mxu0 0.0
    %231 = vmatpush1.msra.mxu0 0.0
    %232 = vmatprep.subr.mxu0 0.0
    %233 = vmatpush1.msra.mxu0 0.0
    %234 = vmatprep.subr.mxu0 0.0
    %235 = vmatpush1.msra.mxu0 0.0
    %236 = vmatprep.subr.mxu0 0.0
    %237 = vmatpush1.msra.mxu0 0.0
    %238 = vmatprep.subr.mxu0 0.0
    %239 = vmatpush1.msra.mxu0 0.0
    %240 = vmatprep.subr.mxu0 0.0
    %241 = vmatpush1.msra.mxu0 0.0
    %242 = vmatprep.subr.mxu0 0.0
    %243 = vmatpush1.msra.mxu0 0.0
    %244 = vmatprep.subr.mxu0 0.0
    %245 = vmatpush1.msra.mxu0 0.0
    %246 = vmatprep.subr.mxu0 0.0
    %247 = vmatpush1.msra.mxu0 0.0
    %248 = vmatprep.subr.mxu0 0.0
    %249 = vmatpush1.msra.mxu0 0.0
    %250 = vmatprep.subr.mxu0 0.0
    %251 = vmatpush1.msra.mxu0 0.0
    %252 = vmatprep.subr.mxu0 0.0
    %253 = vmatpush1.msra.mxu0 0.0
    %254 = vmatprep.subr.mxu0 0.0
    %255 = vmatpush1.msra.mxu0 0.0
    %256 = vmatprep.subr.mxu0 0.0
    %257 = vmatpush1.msra.mxu0 0.0
    %258 = vmatprep.subr.mxu0 0.0
    %259 = vmatpush1.msra.mxu0 0.0
    %260 = vmatprep.subr.mxu0 0.0
    %261 = vmatpush1.msra.mxu0 0.0
    %262 = vmatprep.subr.mxu0 0.0
    %263 = vmatpush1.msra.mxu0 0.0
    %264 = vmatprep.subr.mxu0 0.0
    %265 = vmatpush1.msra.mxu0 0.0
    %266 = vmatprep.subr.mxu0 0.0
    %267 = vmatpush1.msra.mxu0 0.0
    %268 = vmatprep.mubr.f32.mxu0 0.0
    %269 = vmatmul.mubr.f32.gmra.mrb[0].mxu0 %v202
    %v270 = vpop.f32.mrb[0].mxu0
    %v271 = vadd.f32 0.0, %v270
    %v272 = vpop.f32.mrb[0].mxu0
    %273 = vdwg.mxu0
    %v274 = vadd.f32 %v157, %v271
    %v275 = vtanh.pop %v274
    %vm276 = vcmp.gt.s32.totalorder %v195, 0
    %v277 = vsel %vm276, 1, 0
    %278 = vset.pattern.permute.xlu0 0
    %279 = vperm.xlu0 %278, %v277
    %v280 = vpop.permute.xlu0 %279
    %vm281 = vcmp.eq.s32.totalorder %v280, 1
    %v282 = vsel %vm281, %v275, 0.0
    %v284 = vsel %vm200, %v282, 0
    %286 = vmatprep.subr.mxu0 0.0
    %287 = vmatpush1.msra.mxu0 %v196
    %288 = vmatprep.subr.mxu0 0.0
    %289 = vmatpush1.msra.mxu0 %v197
    %290 = vmatprep.subr.mxu0 0.0
    %291 = vmatpush1.msra.mxu0 %v198
    %292 = vmatprep.subr.mxu0 0.0
    %293 = vmatpush1.msra.mxu0 %v199
    %294 = vmatprep.subr.mxu0 0.0
    %295 = vmatpush1.msra.mxu0 0.0
    %296 = vmatprep.subr.mxu0 0.0
    %297 = vmatpush1.msra.mxu0 0.0
    %298 = vmatprep.subr.mxu0 0.0
    %299 = vmatpush1.msra.mxu0 0.0
    %300 = vmatprep.subr.mxu0 0.0
    %301 = vmatpush1.msra.mxu0 0.0
    %302 = vmatprep.subr.mxu0 0.0
    %303 = vmatpush1.msra.mxu0 0.0
    %304 = vmatprep.subr.mxu0 0.0
    %305 = vmatpush1.msra.mxu0 0.0
    %306 = vmatprep.subr.mxu0 0.0
    %307 = vmatpush1.msra.mxu0 0.0
    %308 = vmatprep.subr.mxu0 0.0
    %309 = vmatpush1.msra.mxu0 0.0
    %310 = vmatprep.subr.mxu0 0.0
    %311 = vmatpush1.msra.mxu0 0.0
    %312 = vmatprep.subr.mxu0 0.0
    %313 = vmatpush1.msra.mxu0 0.0
    %314 = vmatprep.subr.mxu0 0.0
    %315 = vmatpush1.msra.mxu0 0.0
    %316 = vmatprep.subr.mxu0 0.0
    %317 = vmatpush1.msra.mxu0 0.0
    %318 = vmatprep.subr.mxu0 0.0
    %319 = vmatpush1.msra.mxu0 0.0
    %320 = vmatprep.subr.mxu0 0.0
    %321 = vmatpush1.msra.mxu0 0.0
    %322 = vmatprep.subr.mxu0 0.0
    %323 = vmatpush1.msra.mxu0 0.0
    %324 = vmatprep.subr.mxu0 0.0
    %325 = vmatpush1.msra.mxu0 0.0
    %326 = vmatprep.subr.mxu0 0.0
    %327 = vmatpush1.msra.mxu0 0.0
    %328 = vmatprep.subr.mxu0 0.0
    %329 = vmatpush1.msra.mxu0 0.0
    %330 = vmatprep.subr.mxu0 0.0
    %331 = vmatpush1.msra.mxu0 0.0
    %332 = vmatprep.subr.mxu0 0.0
    %333 = vmatpush1.msra.mxu0 0.0
    %334 = vmatprep.subr.mxu0 0.0
    %335 = vmatpush1.msra.mxu0 0.0
    %336 = vmatprep.subr.mxu0 0.0
    %337 = vmatpush1.msra.mxu0 0.0
    %338 = vmatprep.subr.mxu0 0.0
    %339 = vmatpush1.msra.mxu0 0.0
    %340 = vmatprep.subr.mxu0 0.0
    %341 = vmatpush1.msra.mxu0 0.0
    %342 = vmatprep.subr.mxu0 0.0
    %343 = vmatpush1.msra.mxu0 0.0
    %344 = vmatprep.subr.mxu0 0.0
    %345 = vmatpush1.msra.mxu0 0.0
    %346 = vmatprep.subr.mxu0 0.0
    %347 = vmatpush1.msra.mxu0 0.0
    %348 = vmatprep.subr.mxu0 0.0
    %349 = vmatpush1.msra.mxu0 0.0
    %350 = vmatprep.mubr.f32.mxu0 0.0
    %351 = vmatmul.mubr.f32.gmra.mrb[0].mxu0 %v284
    %v352 = vpop.f32.mrb[0].mxu0
    %v353 = vadd.f32 0.0, %v352
    %v354 = vpop.f32.mrb[0].mxu0
    %355 = vdwg.mxu0
    %v356 = vadd.f32 %v162, %v353
    %v357 = vtanh.pop %v356
    %vm358 = vcmp.gt.s32.totalorder %v195, 1
    %v359 = vsel %vm358, 1, 0
    %360 = vset.pattern.permute.xlu0 0
    %361 = vperm.xlu0 %360, %v359
    %v362 = vpop.permute.xlu0 %361
    %vm363 = vcmp.eq.s32.totalorder %v362, 1
    %v364 = vsel %vm363, %v357, %v282
    %v366 = vsel %vm200, %v364, 0
    %368 = vmatprep.subr.mxu0 0.0
    %369 = vmatpush1.msra.mxu0 %v196
    %370 = vmatprep.subr.mxu0 0.0
    %371 = vmatpush1.msra.mxu0 %v197
    %372 = vmatprep.subr.mxu0 0.0
    %373 = vmatpush1.msra.mxu0 %v198
    %374 = vmatprep.subr.mxu0 0.0
    %375 = vmatpush1.msra.mxu0 %v199
    %376 = vmatprep.subr.mxu0 0.0
    %377 = vmatpush1.msra.mxu0 0.0
    %378 = vmatprep.subr.mxu0 0.0
    %379 = vmatpush1.msra.mxu0 0.0
    %380 = vmatprep.subr.mxu0 0.0
    %381 = vmatpush1.msra.mxu0 0.0
    %382 = vmatprep.subr.mxu0 0.0
    %383 = vmatpush1.msra.mxu0 0.0
    %384 = vmatprep.subr.mxu0 0.0
    %385 = vmatpush1.msra.mxu0 0.0
    %386 = vmatprep.subr.mxu0 0.0
    %387 = vmatpush1.msra.mxu0 0.0
    %388 = vmatprep.subr.mxu0 0.0
    %389 = vmatpush1.msra.mxu0 0.0
    %390 = vmatprep.subr.mxu0 0.0
    %391 = vmatpush1.msra.mxu0 0.0
    %392 = vmatprep.subr.mxu0 0.0
    %393 = vmatpush1.msra.mxu0 0.0
    %394 = vmatprep.subr.mxu0 0.0
    %395 = vmatpush1.msra.mxu0 0.0
    %396 = vmatprep.subr.mxu0 0.0
    %397 = vmatpush1.msra.mxu0 0.0
    %398 = vmatprep.subr.mxu0 0.0
    %399 = vmatpush1.msra.mxu0 0.0
    %400 = vmatprep.subr.mxu0 0.0
    %401 = vmatpush1.msra.mxu0 0.0
    %402 = vmatprep.subr.mxu0 0.0
    %403 = vmatpush1.msra.mxu0 0.0
    %404 = vmatprep.subr.mxu0 0.0
    %405 = vmatpush1.msra.mxu0 0.0
    %406 = vmatprep.subr.mxu0 0.0
    %407 = vmatpush1.msra.mxu0 0.0
    %408 = vmatprep.subr.mxu0 0.0
    %409 = vmatpush1.msra.mxu0 0.0
    %410 = vmatprep.subr.mxu0 0.0
    %411 = vmatpush1.msra.mxu0 0.0
    %412 = vmatprep.subr.mxu0 0.0
    %413 = vmatpush1.msra.mxu0 0.0
    %414 = vmatprep.subr.mxu0 0.0
    %415 = vmatpush1.msra.mxu0 0.0
    %416 = vmatprep.subr.mxu0 0.0
    %417 = vmatpush1.msra.mxu0 0.0
    %418 = vmatprep.subr.mxu0 0.0
    %419 = vmatpush1.msra.mxu0 0.0
    %420 = vmatprep.subr.mxu0 0.0
    %421 = vmatpush1.msra.mxu0 0.0
    %422 = vmatprep.subr.mxu0 0.0
    %423 = vmatpush1.msra.mxu0 0.0
    %424 = vmatprep.subr.mxu0 0.0
    %425 = vmatpush1.msra.mxu0 0.0
    %426 = vmatprep.subr.mxu0 0.0
    %427 = vmatpush1.msra.mxu0 0.0
    %428 = vmatprep.subr.mxu0 0.0
    %429 = vmatpush1.msra.mxu0 0.0
    %430 = vmatprep.subr.mxu0 0.0
    %431 = vmatpush1.msra.mxu0 0.0
    %432 = vmatprep.mubr.f32.mxu0 0.0
    %433 = vmatmul.mubr.f32.gmra.mrb[0].mxu0 %v366
    %v434 = vpop.f32.mrb[0].mxu0
    %v435 = vadd.f32 0.0, %v434
    %v436 = vpop.f32.mrb[0].mxu0
    %437 = vdwg.mxu0
    %v438 = vadd.f32 %v167, %v435
    %v439 = vtanh.pop %v438
    %vm440 = vcmp.gt.s32.totalorder %v195, 2
    %v441 = vsel %vm440, 1, 0
    %442 = vset.pattern.permute.xlu0 0
    %443 = vperm.xlu0 %442, %v441
    %v444 = vpop.permute.xlu0 %443
    %vm445 = vcmp.eq.s32.totalorder %v444, 1
    %v446 = vsel %vm445, %v439, %v364
    %v448 = vsel %vm200, %v446, 0
    %450 = vmatprep.subr.mxu0 0.0
    %451 = vmatpush1.msra.mxu0 %v196
    %452 = vmatprep.subr.mxu0 0.0
    %453 = vmatpush1.msra.mxu0 %v197
    %454 = vmatprep.subr.mxu0 0.0
    %455 = vmatpush1.msra.mxu0 %v198
    %456 = vmatprep.subr.mxu0 0.0
    %457 = vmatpush1.msra.mxu0 %v199
    %458 = vmatprep.subr.mxu0 0.0
    %459 = vmatpush1.msra.mxu0 0.0
    %460 = vmatprep.subr.mxu0 0.0
    %461 = vmatpush1.msra.mxu0 0.0
    %462 = vmatprep.subr.mxu0 0.0
    %463 = vmatpush1.msra.mxu0 0.0
    %464 = vmatprep.subr.mxu0 0.0
    %465 = vmatpush1.msra.mxu0 0.0
    %466 = vmatprep.subr.mxu0 0.0
    %467 = vmatpush1.msra.mxu0 0.0
    %468 = vmatprep.subr.mxu0 0.0
    %469 = vmatpush1.msra.mxu0 0.0
    %470 = vmatprep.subr.mxu0 0.0
    %471 = vmatpush1.msra.mxu0 0.0
    %472 = vmatprep.subr.mxu0 0.0
    %473 = vmatpush1.msra.mxu0 0.0
    %474 = vmatprep.subr.mxu0 0.0
    %475 = vmatpush1.msra.mxu0 0.0
    %476 = vmatprep.subr.mxu0 0.0
    %477 = vmatpush1.msra.mxu0 0.0
    %478 = vmatprep.subr.mxu0 0.0
    %479 = vmatpush1.msra.mxu0 0.0
    %480 = vmatprep.subr.mxu0 0.0
    %481 = vmatpush1.msra.mxu0 0.0
    %482 = vmatprep.subr.mxu0 0.0
    %483 = vmatpush1.msra.mxu0 0.0
    %484 = vmatprep.subr.mxu0 0.0
    %485 = vmatpush1.msra.mxu0 0.0
    %486 = vmatprep.subr.mxu0 0.0
    %487 = vmatpush1.msra.mxu0 0.0
    %488 = vmatprep.subr.mxu0 0.0
    %489 = vmatpush1.msra.mxu0 0.0
    %490 = vmatprep.subr.mxu0 0.0
    %491 = vmatpush1.msra.mxu0 0.0
    %492 = vmatprep.subr.mxu0 0.0
    %493 = vmatpush1.msra.mxu0 0.0
    %494 = vmatprep.subr.mxu0 0.0
    %495 = vmatpush1.msra.mxu0 0.0
    %496 = vmatprep.subr.mxu0 0.0
    %497 = vmatpush1.msra.mxu0 0.0
    %498 = vmatprep.subr.mxu0 0.0
    %499 = vmatpush1.msra.mxu0 0.0
    %500 = vmatprep.subr.mxu0 0.0
    %501 = vmatpush1.msra.mxu0 0.0
    %502 = vmatprep.subr.mxu0 0.0
    %503 = vmatpush1.msra.mxu0 0.0
    %504 = vmatprep.subr.mxu0 0.0
    %505 = vmatpush1.msra.mxu0 0.0
    %506 = vmatprep.subr.mxu0 0.0
    %507 = vmatpush1.msra.mxu0 0.0
    %508 = vmatprep.subr.mxu0 0.0
    %509 = vmatpush1.msra.mxu0 0.0
    %510 = vmatprep.subr.mxu0 0.0
    %511 = vmatpush1.msra.mxu0 0.0
    %512 = vmatprep.subr.mxu0 0.0
    %513 = vmatpush1.msra.mxu0 0.0
    %514 = vmatprep.mubr.f32.mxu0 0.0
    %515 = vmatmul.mubr.f32.gmra.mrb[0].mxu0 %v448
    %v516 = vpop.f32.mrb[0].mxu0
    %v517 = vadd.f32 0.0, %v516
    %v518 = vpop.f32.mrb[0].mxu0
    %519 = vdwg.mxu0
    %v520 = vadd.f32 %v172, %v517
    %v521 = vtanh.pop %v520
    %vm522 = vcmp.gt.s32.totalorder %v195, 3
    %v523 = vsel %vm522, 1, 0
    %524 = vset.pattern.permute.xlu0 0
    %525 = vperm.xlu0 %524, %v523
    %v526 = vpop.permute.xlu0 %525
    %vm527 = vcmp.eq.s32.totalorder %v526, 1
    %v528 = vsel %vm527, %v521, %v446
    %v530 = vsel %vm200, %v528, 0
    %532 = vmatprep.subr.mxu0 0.0
    %533 = vmatpush1.msra.mxu0 %v196
    %534 = vmatprep.subr.mxu0 0.0
    %535 = vmatpush1.msra.mxu0 %v197
    %536 = vmatprep.subr.mxu0 0.0
    %537 = vmatpush1.msra.mxu0 %v198
    %538 = vmatprep.subr.mxu0 0.0
    %539 = vmatpush1.msra.mxu0 %v199
    %540 = vmatprep.subr.mxu0 0.0
    %541 = vmatpush1.msra.mxu0 0.0
    %542 = vmatprep.subr.mxu0 0.0
    %543 = vmatpush1.msra.mxu0 0.0
    %544 = vmatprep.subr.mxu0 0.0
    %545 = vmatpush1.msra.mxu0 0.0
    %546 = vmatprep.subr.mxu0 0.0
    %547 = vmatpush1.msra.mxu0 0.0
    %548 = vmatprep.subr.mxu0 0.0
    %549 = vmatpush1.msra.mxu0 0.0
    %550 = vmatprep.subr.mxu0 0.0
    %551 = vmatpush1.msra.mxu0 0.0
    %552 = vmatprep.subr.mxu0 0.0
    %553 = vmatpush1.msra.mxu0 0.0
    %554 = vmatprep.subr.mxu0 0.0
    %555 = vmatpush1.msra.mxu0 0.0
    %556 = vmatprep.subr.mxu0 0.0
    %557 = vmatpush1.msra.mxu0 0.0
    %558 = vmatprep.subr.mxu0 0.0
    %559 = vmatpush1.msra.mxu0 0.0
    %560 = vmatprep.subr.mxu0 0.0
    %561 = vmatpush1.msra.mxu0 0.0
    %562 = vmatprep.subr.mxu0 0.0
    %563 = vmatpush1.msra.mxu0 0.0
    %564 = vmatprep.subr.mxu0 0.0
    %565 = vmatpush1.msra.mxu0 0.0
    %566 = vmatprep.subr.mxu0 0.0
    %567 = vmatpush1.msra.mxu0 0.0
    %568 = vmatprep.subr.mxu0 0.0
    %569 = vmatpush1.msra.mxu0 0.0
    %570 = vmatprep.subr.mxu0 0.0
    %571 = vmatpush1.msra.mxu0 0.0
    %572 = vmatprep.subr.mxu0 0.0
    %573 = vmatpush1.msra.mxu0 0.0
    %574 = vmatprep.subr.mxu0 0.0
    %575 = vmatpush1.msra.mxu0 0.0
    %576 = vmatprep.subr.mxu0 0.0
    %577 = vmatpush1.msra.mxu0 0.0
    %578 = vmatprep.subr.mxu0 0.0
    %579 = vmatpush1.msra.mxu0 0.0
    %580 = vmatprep.subr.mxu0 0.0
    %581 = vmatpush1.msra.mxu0 0.0
    %582 = vmatprep.subr.mxu0 0.0
    %583 = vmatpush1.msra.mxu0 0.0
    %584 = vmatprep.subr.mxu0 0.0
    %585 = vmatpush1.msra.mxu0 0.0
    %586 = vmatprep.subr.mxu0 0.0
    %587 = vmatpush1.msra.mxu0 0.0
    %588 = vmatprep.subr.mxu0 0.0
    %589 = vmatpush1.msra.mxu0 0.0
    %590 = vmatprep.subr.mxu0 0.0
    %591 = vmatpush1.msra.mxu0 0.0
    %592 = vmatprep.subr.mxu0 0.0
    %593 = vmatpush1.msra.mxu0 0.0
    %594 = vmatprep.subr.mxu0 0.0
    %595 = vmatpush1.msra.mxu0 0.0
    %596 = vmatprep.mubr.f32.mxu0 0.0
    %597 = vmatmul.mubr.f32.gmra.mrb[0].mxu0 %v530
    %v598 = vpop.f32.mrb[0].mxu0
    %v599 = vadd.f32 0.0, %v598
    %v600 = vpop.f32.mrb[0].mxu0
    %601 = vdwg.mxu0
    %v602 = vadd.f32 %v177, %v599
    %v603 = vtanh.pop %v602
    %vm604 = vcmp.gt.s32.totalorder %v195, 4
    %v605 = vsel %vm604, 1, 0
    %606 = vset.pattern.permute.xlu0 0
    %607 = vperm.xlu0 %606, %v605
    %v608 = vpop.permute.xlu0 %607
    %vm609 = vcmp.eq.s32.totalorder %v608, 1
    %v610 = vsel %vm609, %v603, %v528
    %v612 = vsel %vm200, %v610, 0
    %614 = vmatprep.subr.mxu0 0.0
    %615 = vmatpush1.msra.mxu0 %v196
    %616 = vmatprep.subr.mxu0 0.0
    %617 = vmatpush1.msra.mxu0 %v197
    %618 = vmatprep.subr.mxu0 0.0
    %619 = vmatpush1.msra.mxu0 %v198
    %620 = vmatprep.subr.mxu0 0.0
    %621 = vmatpush1.msra.mxu0 %v199
    %622 = vmatprep.subr.mxu0 0.0
    %623 = vmatpush1.msra.mxu0 0.0
    %624 = vmatprep.subr.mxu0 0.0
    %625 = vmatpush1.msra.mxu0 0.0
    %626 = vmatprep.subr.mxu0 0.0
    %627 = vmatpush1.msra.mxu0 0.0
    %628 = vmatprep.subr.mxu0 0.0
    %629 = vmatpush1.msra.mxu0 0.0
    %630 = vmatprep.subr.mxu0 0.0
    %631 = vmatpush1.msra.mxu0 0.0
    %632 = vmatprep.subr.mxu0 0.0
    %633 = vmatpush1.msra.mxu0 0.0
    %634 = vmatprep.subr.mxu0 0.0
    %635 = vmatpush1.msra.mxu0 0.0
    %636 = vmatprep.subr.mxu0 0.0
    %637 = vmatpush1.msra.mxu0 0.0
    %638 = vmatprep.subr.mxu0 0.0
    %639 = vmatpush1.msra.mxu0 0.0
    %640 = vmatprep.subr.mxu0 0.0
    %641 = vmatpush1.msra.mxu0 0.0
    %642 = vmatprep.subr.mxu0 0.0
    %643 = vmatpush1.msra.mxu0 0.0
    %644 = vmatprep.subr.mxu0 0.0
    %645 = vmatpush1.msra.mxu0 0.0
    %646 = vmatprep.subr.mxu0 0.0
    %647 = vmatpush1.msra.mxu0 0.0
    %648 = vmatprep.subr.mxu0 0.0
    %649 = vmatpush1.msra.mxu0 0.0
    %650 = vmatprep.subr.mxu0 0.0
    %651 = vmatpush1.msra.mxu0 0.0
    %652 = vmatprep.subr.mxu0 0.0
    %653 = vmatpush1.msra.mxu0 0.0
    %654 = vmatprep.subr.mxu0 0.0
    %655 = vmatpush1.msra.mxu0 0.0
    %656 = vmatprep.subr.mxu0 0.0
    %657 = vmatpush1.msra.mxu0 0.0
    %658 = vmatprep.subr.mxu0 0.0
    %659 = vmatpush1.msra.mxu0 0.0
    %660 = vmatprep.subr.mxu0 0.0
    %661 = vmatpush1.msra.mxu0 0.0
    %662 = vmatprep.subr.mxu0 0.0
    %663 = vmatpush1.msra.mxu0 0.0
    %664 = vmatprep.subr.mxu0 0.0
    %665 = vmatpush1.msra.mxu0 0.0
    %666 = vmatprep.subr.mxu0 0.0
    %667 = vmatpush1.msra.mxu0 0.0
    %668 = vmatprep.subr.mxu0 0.0
    %669 = vmatpush1.msra.mxu0 0.0
    %670 = vmatprep.subr.mxu0 0.0
    %671 = vmatpush1.msra.mxu0 0.0
    %672 = vmatprep.subr.mxu0 0.0
    %673 = vmatpush1.msra.mxu0 0.0
    %674 = vmatprep.subr.mxu0 0.0
    %675 = vmatpush1.msra.mxu0 0.0
    %676 = vmatprep.subr.mxu0 0.0
    %677 = vmatpush1.msra.mxu0 0.0
    %678 = vmatprep.mubr.f32.mxu0 0.0
    %679 = vmatmul.mubr.f32.gmra.mrb[0].mxu0 %v612
    %v680 = vpop.f32.mrb[0].mxu0
    %v681 = vadd.f32 0.0, %v680
    %v682 = vpop.f32.mrb[0].mxu0
    %683 = vdwg.mxu0
    %v684 = vadd.f32 %v182, %v681
    %v685 = vtanh.pop %v684
    %vm686 = vcmp.gt.s32.totalorder %v195, 5
    %v687 = vsel %vm686, 1, 0
    %688 = vset.pattern.permute.xlu0 0
    %689 = vperm.xlu0 %688, %v687
    %v690 = vpop.permute.xlu0 %689
    %vm691 = vcmp.eq.s32.totalorder %v690, 1
    %v692 = vsel %vm691, %v685, %v610
    %v694 = vsel %vm200, %v692, 0
    %696 = vmatprep.subr.mxu0 0.0
    %697 = vmatpush1.msra.mxu0 %v196
    %698 = vmatprep.subr.mxu0 0.0
    %699 = vmatpush1.msra.mxu0 %v197
    %700 = vmatprep.subr.mxu0 0.0
    %701 = vmatpush1.msra.mxu0 %v198
    %702 = vmatprep.subr.mxu0 0.0
    %703 = vmatpush1.msra.mxu0 %v199
    %704 = vmatprep.subr.mxu0 0.0
    %705 = vmatpush1.msra.mxu0 0.0
    %706 = vmatprep.subr.mxu0 0.0
    %707 = vmatpush1.msra.mxu0 0.0
    %708 = vmatprep.subr.mxu0 0.0
    %709 = vmatpush1.msra.mxu0 0.0
    %710 = vmatprep.subr.mxu0 0.0
    %711 = vmatpush1.msra.mxu0 0.0
    %712 = vmatprep.subr.mxu0 0.0
    %713 = vmatpush1.msra.mxu0 0.0
    %714 = vmatprep.subr.mxu0 0.0
    %715 = vmatpush1.msra.mxu0 0.0
    %716 = vmatprep.subr.mxu0 0.0
    %717 = vmatpush1.msra.mxu0 0.0
    %718 = vmatprep.subr.mxu0 0.0
    %719 = vmatpush1.msra.mxu0 0.0
    %720 = vmatprep.subr.mxu0 0.0
    %721 = vmatpush1.msra.mxu0 0.0
    %722 = vmatprep.subr.mxu0 0.0
    %723 = vmatpush1.msra.mxu0 0.0
    %724 = vmatprep.subr.mxu0 0.0
    %725 = vmatpush1.msra.mxu0 0.0
    %726 = vmatprep.subr.mxu0 0.0
    %727 = vmatpush1.msra.mxu0 0.0
    %728 = vmatprep.subr.mxu0 0.0
    %729 = vmatpush1.msra.mxu0 0.0
    %730 = vmatprep.subr.mxu0 0.0
    %731 = vmatpush1.msra.mxu0 0.0
    %732 = vmatprep.subr.mxu0 0.0
    %733 = vmatpush1.msra.mxu0 0.0
    %734 = vmatprep.subr.mxu0 0.0
    %735 = vmatpush1.msra.mxu0 0.0
    %736 = vmatprep.subr.mxu0 0.0
    %737 = vmatpush1.msra.mxu0 0.0
    %738 = vmatprep.subr.mxu0 0.0
    %739 = vmatpush1.msra.mxu0 0.0
    %740 = vmatprep.subr.mxu0 0.0
    %741 = vmatpush1.msra.mxu0 0.0
    %742 = vmatprep.subr.mxu0 0.0
    %743 = vmatpush1.msra.mxu0 0.0
    %744 = vmatprep.subr.mxu0 0.0
    %745 = vmatpush1.msra.mxu0 0.0
    %746 = vmatprep.subr.mxu0 0.0
    %747 = vmatpush1.msra.mxu0 0.0
    %748 = vmatprep.subr.mxu0 0.0
    %749 = vmatpush1.msra.mxu0 0.0
    %750 = vmatprep.subr.mxu0 0.0
    %751 = vmatpush1.msra.mxu0 0.0
    %752 = vmatprep.subr.mxu0 0.0
    %753 = vmatpush1.msra.mxu0 0.0
    %754 = vmatprep.subr.mxu0 0.0
    %755 = vmatpush1.msra.mxu0 0.0
    %756 = vmatprep.subr.mxu0 0.0
    %757 = vmatpush1.msra.mxu0 0.0
    %758 = vmatprep.subr.mxu0 0.0
    %759 = vmatpush1.msra.mxu0 0.0
    %760 = vmatprep.mubr.f32.mxu0 0.0
    %761 = vmatmul.mubr.f32.gmra.mrb[0].mxu0 %v694
    %v762 = vpop.f32.mrb[0].mxu0
    %v763 = vadd.f32 0.0, %v762
    %v764 = vpop.f32.mrb[0].mxu0
    %765 = vdwg.mxu0
    %v766 = vadd.f32 %v187, %v763
    %v767 = vtanh.pop %v766
    %vm768 = vcmp.gt.s32.totalorder %v195, 6
    %v769 = vsel %vm768, 1, 0
    %770 = vset.pattern.permute.xlu0 0
    %771 = vperm.xlu0 %770, %v769
    %v772 = vpop.permute.xlu0 %771
    %vm773 = vcmp.eq.s32.totalorder %v772, 1
    %v774 = vsel %vm773, %v767, %v692
    %v776 = vsel %vm200, %v774, 0
    %778 = vmatprep.subr.mxu0 0.0
    %779 = vmatpush1.msra.mxu0 %v196
    %780 = vmatprep.subr.mxu0 0.0
    %781 = vmatpush1.msra.mxu0 %v197
    %782 = vmatprep.subr.mxu0 0.0
    %783 = vmatpush1.msra.mxu0 %v198
    %784 = vmatprep.subr.mxu0 0.0
    %785 = vmatpush1.msra.mxu0 %v199
    %786 = vmatprep.subr.mxu0 0.0
    %787 = vmatpush1.msra.mxu0 0.0
    %788 = vmatprep.subr.mxu0 0.0
    %789 = vmatpush1.msra.mxu0 0.0
    %790 = vmatprep.subr.mxu0 0.0
    %791 = vmatpush1.msra.mxu0 0.0
    %792 = vmatprep.subr.mxu0 0.0
    %793 = vmatpush1.msra.mxu0 0.0
    %794 = vmatprep.subr.mxu0 0.0
    %795 = vmatpush1.msra.mxu0 0.0
    %796 = vmatprep.subr.mxu0 0.0
    %797 = vmatpush1.msra.mxu0 0.0
    %798 = vmatprep.subr.mxu0 0.0
    %799 = vmatpush1.msra.mxu0 0.0
    %800 = vmatprep.subr.mxu0 0.0
    %801 = vmatpush1.msra.mxu0 0.0
    %802 = vmatprep.subr.mxu0 0.0
    %803 = vmatpush1.msra.mxu0 0.0
    %804 = vmatprep.subr.mxu0 0.0
    %805 = vmatpush1.msra.mxu0 0.0
    %806 = vmatprep.subr.mxu0 0.0
    %807 = vmatpush1.msra.mxu0 0.0
    %808 = vmatprep.subr.mxu0 0.0
    %809 = vmatpush1.msra.mxu0 0.0
    %810 = vmatprep.subr.mxu0 0.0
    %811 = vmatpush1.msra.mxu0 0.0
    %812 = vmatprep.subr.mxu0 0.0
    %813 = vmatpush1.msra.mxu0 0.0
    %814 = vmatprep.subr.mxu0 0.0
    %815 = vmatpush1.msra.mxu0 0.0
    %816 = vmatprep.subr.mxu0 0.0
    %817 = vmatpush1.msra.mxu0 0.0
    %818 = vmatprep.subr.mxu0 0.0
    %819 = vmatpush1.msra.mxu0 0.0
    %820 = vmatprep.subr.mxu0 0.0
    %821 = vmatpush1.msra.mxu0 0.0
    %822 = vmatprep.subr.mxu0 0.0
    %823 = vmatpush1.msra.mxu0 0.0
    %824 = vmatprep.subr.mxu0 0.0
    %825 = vmatpush1.msra.mxu0 0.0
    %826 = vmatprep.subr.mxu0 0.0
    %827 = vmatpush1.msra.mxu0 0.0
    %828 = vmatprep.subr.mxu0 0.0
    %829 = vmatpush1.msra.mxu0 0.0
    %830 = vmatprep.subr.mxu0 0.0
    %831 = vmatpush1.msra.mxu0 0.0
    %832 = vmatprep.subr.mxu0 0.0
    %833 = vmatpush1.msra.mxu0 0.0
    %834 = vmatprep.subr.mxu0 0.0
    %835 = vmatpush1.msra.mxu0 0.0
    %836 = vmatprep.subr.mxu0 0.0
    %837 = vmatpush1.msra.mxu0 0.0
    %838 = vmatprep.subr.mxu0 0.0
    %839 = vmatpush1.msra.mxu0 0.0
    %840 = vmatprep.subr.mxu0 0.0
    %841 = vmatpush1.msra.mxu0 0.0
    %842 = vmatprep.mubr.f32.mxu0 0.0
    %843 = vmatmul.mubr.f32.gmra.mrb[0].mxu0 %v776
    %v844 = vpop.f32.mrb[0].mxu0
    %v845 = vadd.f32 0.0, %v844
    %v846 = vpop.f32.mrb[0].mxu0
    %847 = vdwg.mxu0
    %v848 = vadd.f32 %v192, %v845
    %v849 = vtanh.pop %v848
    %vm850 = vcmp.gt.s32.totalorder %v195, 7
    %v851 = vsel %vm850, 1, 0
    %852 = vset.pattern.permute.xlu0 0
    %853 = vperm.xlu0 %852, %v851
    %v854 = vpop.permute.xlu0 %853
    %vm855 = vcmp.eq.s32.totalorder %v854, 1
    %v856 = vsel %vm855, %v849, %v774
    %v857 = vld [vmem:[%s4] sm:$0xff]
    %v858 = vld [vmem:[%s4 + $0x8] sm:$0xff]
    %v859 = vld [vmem:[%s4 + $0x10] sm:$0xff]
    %v860 = vld [vmem:[%s4 + $0x18] sm:$0xff]
    %v861 = vld [vmem:[%s5] sm:$0x1]
    %v863 = vlaneseq
    %v864 = vshrl.u32 %v863, 7
    %v865 = vsub.s32 0, %v864
    %v866 = vrot.slane %v861, %v865
    %v869 = vsel %vm200, %v856, 0
    %871 = vmatprep.subr.mxu0 0.0
    %872 = vmatpush1.msra.mxu0 %v857
    %873 = vmatprep.subr.mxu0 0.0
    %874 = vmatpush1.msra.mxu0 %v858
    %875 = vmatprep.subr.mxu0 0.0
    %876 = vmatpush1.msra.mxu0 %v859
    %877 = vmatprep.subr.mxu0 0.0
    %878 = vmatpush1.msra.mxu0 %v860
    %879 = vmatprep.subr.mxu0 0.0
    %880 = vmatpush1.msra.mxu0 0.0
    %881 = vmatprep.subr.mxu0 0.0
    %882 = vmatpush1.msra.mxu0 0.0
    %883 = vmatprep.subr.mxu0 0.0
    %884 = vmatpush1.msra.mxu0 0.0
    %885 = vmatprep.subr.mxu0 0.0
    %886 = vmatpush1.msra.mxu0 0.0
    %887 = vmatprep.subr.mxu0 0.0
    %888 = vmatpush1.msra.mxu0 0.0
    %889 = vmatprep.subr.mxu0 0.0
    %890 = vmatpush1.msra.mxu0 0.0
    %891 = vmatprep.subr.mxu0 0.0
    %892 = vmatpush1.msra.mxu0 0.0
    %893 = vmatprep.subr.mxu0 0.0
    %894 = vmatpush1.msra.mxu0 0.0
    %895 = vmatprep.subr.mxu0 0.0
    %896 = vmatpush1.msra.mxu0 0.0
    %897 = vmatprep.subr.mxu0 0.0
    %898 = vmatpush1.msra.mxu0 0.0
    %899 = vmatprep.subr.mxu0 0.0
    %900 = vmatpush1.msra.mxu0 0.0
    %901 = vmatprep.subr.mxu0 0.0
    %902 = vmatpush1.msra.mxu0 0.0
    %903 = vmatprep.subr.mxu0 0.0
    %904 = vmatpush1.msra.mxu0 0.0
    %905 = vmatprep.subr.mxu0 0.0
    %906 = vmatpush1.msra.mxu0 0.0
    %907 = vmatprep.subr.mxu0 0.0
    %908 = vmatpush1.msra.mxu0 0.0
    %909 = vmatprep.subr.mxu0 0.0
    %910 = vmatpush1.msra.mxu0 0.0
    %911 = vmatprep.subr.mxu0 0.0
    %912 = vmatpush1.msra.mxu0 0.0
    %913 = vmatprep.subr.mxu0 0.0
    %914 = vmatpush1.msra.mxu0 0.0
    %915 = vmatprep.subr.mxu0 0.0
    %916 = vmatpush1.msra.mxu0 0.0
    %917 = vmatprep.subr.mxu0 0.0
    %918 = vmatpush1.msra.mxu0 0.0
    %919 = vmatprep.subr.mxu0 0.0
    %920 = vmatpush1.msra.mxu0 0.0
    %921 = vmatprep.subr.mxu0 0.0
    %922 = vmatpush1.msra.mxu0 0.0
    %923 = vmatprep.subr.mxu0 0.0
    %924 = vmatpush1.msra.mxu0 0.0
    %925 = vmatprep.subr.mxu0 0.0
    %926 = vmatpush1.msra.mxu0 0.0
    %927 = vmatprep.subr.mxu0 0.0
    %928 = vmatpush1.msra.mxu0 0.0
    %929 = vmatprep.subr.mxu0 0.0
    %930 = vmatpush1.msra.mxu0 0.0
    %931 = vmatprep.subr.mxu0 0.0
    %932 = vmatpush1.msra.mxu0 0.0
    %933 = vmatprep.subr.mxu0 0.0
    %934 = vmatpush1.msra.mxu0 0.0
    %935 = vmatprep.mubr.f32.mxu0 0.0
    %936 = vmatmul.mubr.f32.gmra.mrb[0].mxu0 %v869
    %v937 = vpop.f32.mrb[0].mxu0
    %v938 = vadd.f32 %v866, %v937
    %v939 = vpop.f32.mrb[0].mxu0
    %940 = vdwg.mxu0
    %941 = vst [vmem:[#allocation2] sm:$0xff] %v938
    // Predicated region
    $region26: #{tpu_custom_call.1} parent=1 // pred_check
      _
    $region27: #{tpu_custom_call.1} parent=1 // pred_check_branch
      %943 = sbr.rel (0) target = $region29
    $region28: #{tpu_custom_call.1} parent=1 // pred_region
      %s945 = ssub.s32 128, 128
      %946 = vsyncadd [#allocation3], %s945
      %s948 = sshll.u32 [#allocation2], 4
      %s949 = int_to_ptr.vmem [resolvable:$true] %s948
      %951 = dma.vmem_to_hbm [thread:$0]  %s949, 128, %s6, [#allocation3]
    $region29: #{tpu_custom_call.1} parent=1 // pred_fallthru
      _
    // Predicated region
    $region30: #{tpu_custom_call.1} parent=1 // pred_check
      _
    $region31: #{tpu_custom_call.1} parent=1 // pred_check_branch
      %953 = sbr.rel (0) target = $region33
    $region32: #{tpu_custom_call.1} parent=1 // pred_region
      %954 = dma.done [#allocation3], 128
    $region33: #{tpu_custom_call.1} parent=1 // pred_fallthru
      _
    %955 = vsyncpa [#allocation3], 1

</llo_original>
